<compile_context>
chip_gen: v6e
topology: v6e:2x2x1
jax: 0.10.0
libtpu: 0.0.40
codegen_flags: <defaults>
</compile_context>

<pallas_src>
import numpy as np

import jax
import jax.numpy as jnp
from jax.experimental import pallas as pl
from jax.experimental.pallas import tpu as pltpu

LANE = 128


def _round_up(x: int, m: int) -> int:
    return ((x + m - 1) // m) * m


# ----------------------------------------------------------------------------
# Architecture derivation — mirrors AutoEncoderModule.__init__ exactly.
# ----------------------------------------------------------------------------
def layer_sizes(n_features: int, sequence_length: int, hidden_size: int):
    input_length = n_features * sequence_length
    dec_steps = 2 ** np.arange(
        max(np.ceil(np.log2(hidden_size)), 2), np.log2(input_length)
    )[1:]
    dec_setup = np.concatenate([[hidden_size], dec_steps.repeat(2), [input_length]])
    enc_setup = dec_setup[::-1]
    enc_pairs = [(int(a), int(b)) for a, b in enc_setup.reshape(-1, 2)]
    dec_pairs = [(int(a), int(b)) for a, b in dec_setup.reshape(-1, 2)]
    return enc_pairs, dec_pairs


# ----------------------------------------------------------------------------
# Deterministic parameter init (PyTorch nn.Linear default: U(-1/sqrt(in), ...))
# ----------------------------------------------------------------------------
def init_params(key, pairs):
    params = []
    for (fan_in, fan_out) in pairs:
        key, kw, kb = jax.random.split(key, 3)
        bound = 1.0 / np.sqrt(fan_in)
        w = jax.random.uniform(kw, (fan_out, fan_in), jnp.float32, -bound, bound)
        b = jax.random.uniform(kb, (fan_out,), jnp.float32, -bound, bound)
        params.append((w, b))
    return key, params


# ----------------------------------------------------------------------------
# Pallas kernel: fused MLP chain  h = tanh(h @ W_i + b_i), two outputs
# (reconstruction after last decoder layer, latent after last encoder layer).
# Ref order: x, (w0, b0), ..., (w_{L-1}, b_{L-1}), recon_out, latent_out
# ----------------------------------------------------------------------------
def _make_mlp_kernel(n_layers: int, n_enc_layers: int, act_flags):
    def kernel(*refs):
        x_ref = refs[0]
        recon_ref = refs[1 + 2 * n_layers]
        latent_ref = refs[2 + 2 * n_layers]
        h = x_ref[...]                         # bf16 tile (TB, D_in_pad)
        for i in range(n_layers):
            w = refs[1 + 2 * i][...]           # bf16 (in_pad, out_pad) — MXU operand
            b = refs[2 + 2 * i][...]           # f32  (1, out_pad)
            h = jnp.dot(h.astype(jnp.bfloat16), w,
                        preferred_element_type=jnp.float32) + b
            if act_flags[i]:                   # Tanh between layers (not after last)
                h = jnp.tanh(h)                # EUP slot — overlaps MXU work
            if i == n_enc_layers - 1:
                latent_ref[...] = h.astype(latent_ref.dtype)
        recon_ref[...] = h.astype(recon_ref.dtype)
    return kernel


# ----------------------------------------------------------------------------
# Module wrapper
# ----------------------------------------------------------------------------
class AutoEncoderPallas:
    def __init__(self, n_features, sequence_length, hidden_size, seed=0,
                 batch_tile=256):
        self.n_features = n_features
        self.sequence_length = sequence_length
        self.hidden_size = hidden_size
        self.input_length = n_features * sequence_length
        self.batch_tile = batch_tile

        enc_pairs, dec_pairs = layer_sizes(n_features, sequence_length, hidden_size)
        key = jax.random.PRNGKey(seed)
        key, self.enc_params = init_params(key, enc_pairs)   # f32, PyTorch (out,in)
        key, self.dec_params = init_params(key, dec_pairs)

        # activation after every linear except the last of encoder / decoder
        # (PyTorch spec uses a configurable `activation`; Tanh assumed here)
        self.enc_act = [True] * (len(enc_pairs) - 1) + [False]
        self.dec_act = [True] * (len(dec_pairs) - 1) + [False]
        self._acts = tuple(self.enc_act + self.dec_act)
        self._n_enc = len(enc_pairs)

        # --- Pad + transpose parameters ONCE (cached, not per forward) -------
        self._din_pad = _round_up(self.input_length, LANE)
        self._h_pad = _round_up(self.hidden_size, LANE)
        self._kw, self._kb = [], []
        for (w, b), (fi, fo) in zip(self.enc_params + self.dec_params,
                                    enc_pairs + dec_pairs):
            in_pad, out_pad = _round_up(fi, LANE), _round_up(fo, LANE)
            wt = jnp.zeros((in_pad, out_pad), jnp.bfloat16)
            wt = wt.at[:fi, :fo].set(w.T.astype(jnp.bfloat16))   # (in, out) bf16
            bb = jnp.zeros((1, out_pad), jnp.float32).at[:, :fo].set(b[None, :])
            self._kw.append(wt)
            self._kb.append(bb)
        # TODO(synk): for very large input_length the resident weight stack may
        # exceed v7x's 64 MiB VMEM; K-tile the first/last layers in that regime.

        self._jit_fwd = jax.jit(self._forward_padded)

    # ------------------------------------------------------------------ core
    def _forward_padded(self, x):
        """x: (B, input_length) f32 -> (recon (B, input_length), latent (B, H))."""
        B, D = x.shape
        TB = min(self.batch_tile, _round_up(max(B, 1), 16))   # >=16 sublanes (bf16 x)
        B_pad = _round_up(B, TB)
        D_in_pad, D_out_pad, H_pad = self._din_pad, self._din_pad, self._h_pad

        # bf16 input tile: the first matmul casts to bf16 anyway -> numerically
        # identical, but halves the streamed-input HBM traffic.
        xp = jnp.zeros((B_pad, D_in_pad), jnp.bfloat16).at[:B, :D].set(
            x.astype(jnp.bfloat16))

        in_specs = [pl.BlockSpec((TB, D_in_pad), lambda i: (i, 0))]
        args = [xp]
        for w, b in zip(self._kw, self._kb):
            in_specs.append(pl.BlockSpec(w.shape, lambda i: (0, 0)))  # resident
            in_specs.append(pl.BlockSpec(b.shape, lambda i: (0, 0)))  # resident
            args.extend([w, b])

        out_shape = (jax.ShapeDtypeStruct((B_pad, D_out_pad), jnp.float32),
                     jax.ShapeDtypeStruct((B_pad, H_pad), jnp.float32))
        out_specs = (pl.BlockSpec((TB, D_out_pad), lambda i: (i, 0)),
                     pl.BlockSpec((TB, H_pad), lambda i: (i, 0)))

        # explicit scoped-VMEM budget with headroom (v5e default is only 16 MiB),
        # capped below v7x's 64 MiB physical VMEM.
        needed = sum(int(np.prod(a.shape)) * a.dtype.itemsize for a in args)
        needed += 2 * (TB * D_in_pad * 2 + TB * D_out_pad * 4 + TB * H_pad * 4)
        vmem_limit = int(min(max(2 * needed + (4 << 20), 16 << 20), 48 << 20))

        # advisory cost estimate for XLA's scheduler around the custom call
        flops = 2 * B_pad * sum(int(w.shape[0]) * int(w.shape[1]) for w in self._kw)
        transc = B_pad * sum(int(w.shape[1])
                             for w, a in zip(self._kw, self._acts) if a)
        bytes_acc = (int(xp.nbytes) + needed
                     + B_pad * (D_out_pad + H_pad) * 4)
        cost = pl.CostEstimate(flops=flops, transcendentals=transc,
                               bytes_accessed=bytes_acc)

        kernel = _make_mlp_kernel(len(self._kw), self._n_enc, self._acts)
        recon_p, latent_p = pl.pallas_call(
            kernel,
            grid=(pl.cdiv(B_pad, TB),),
            in_specs=in_specs,
            out_specs=out_specs,
            out_shape=out_shape,
            compiler_params=pltpu.CompilerParams(
                dimension_semantics=("parallel",),     # megacore on v7x
                vmem_limit_bytes=vmem_limit),
            cost_estimate=cost,
        )(*args)

        return recon_p[:B, :self.input_length], latent_p[:B, :self.hidden_size]

    # --------------------------------------------------------------- forward
    def __call__(self, ts_batch, return_latent: bool = False):
        B = ts_batch.shape[0]
        x = ts_batch.reshape(B, -1).astype(jnp.float32)  # == ts_batch.view(B,-1).float()
        recon, latent = self._jit_fwd(x)
        if return_latent:
            return latent
        return recon.reshape(ts_batch.shape)             # == dec.view(ts_batch.size())


# ----------------------------------------------------------------------------
# Pure-JAX f32 reference for sanity checking
# ----------------------------------------------------------------------------
def reference_forward(ts_batch, enc_params, dec_params, enc_act, dec_act):
    B = ts_batch.shape[0]
    h = ts_batch.reshape(B, -1).astype(jnp.float32)
    for (w, b), a in zip(enc_params, enc_act):
        h = h @ w.T + b
        if a:
            h = jnp.tanh(h)
    latent = h
    for (w, b), a in zip(dec_params, dec_act):
        h = h @ w.T + b
        if a:
            h = jnp.tanh(h)
    return h.reshape(ts_batch.shape), latent


if __name__ == "__main__":
    # ts_batch (batch, sequence_length, n_features); input_length = 32
    # -> encoder 32-16-8-4, decoder 4-8-16-32
    batch, seq_len, n_feat, hidden = 2, 8, 4, 4
    model = AutoEncoderPallas(n_features=n_feat, sequence_length=seq_len,
                              hidden_size=hidden, seed=0)

    key = jax.random.PRNGKey(0)
    ts_batch = jax.random.normal(key, (batch, seq_len, n_feat), dtype=jnp.float32)

    recon = jax.block_until_ready(model(ts_batch))
    latent = jax.block_until_ready(model(ts_batch, return_latent=True))

    ref_recon, ref_latent = reference_forward(
        ts_batch, model.enc_params, model.dec_params, model.enc_act, model.dec_act)

    assert recon.shape == ts_batch.shape
    assert latent.shape == (batch, hidden)
    # bf16 matmul operands with f32 accumulation -> loosened tolerance vs f32 ref
    assert bool(jnp.allclose(recon, ref_recon, atol=2e-2, rtol=2e-2)), \
        "Pallas reconstruction mismatch vs reference"
    assert bool(jnp.allclose(latent, ref_latent, atol=2e-2, rtol=2e-2)), \
        "Pallas latent mismatch vs reference"

    print("KERNEL_OK")
</pallas_src>

<mosaic_0001>
module attributes {stable_mosaic.version = 11 : i64} {
  func.func @kernel(%arg0: i32, %arg1: memref<16x128xbf16, #tpu.memory_space<vmem>>, %arg2: memref<128x128xbf16, #tpu.memory_space<vmem>>, %arg3: memref<1x128xf32, #tpu.memory_space<vmem>>, %arg4: memref<128x128xbf16, #tpu.memory_space<vmem>>, %arg5: memref<1x128xf32, #tpu.memory_space<vmem>>, %arg6: memref<128x128xbf16, #tpu.memory_space<vmem>>, %arg7: memref<1x128xf32, #tpu.memory_space<vmem>>, %arg8: memref<128x128xbf16, #tpu.memory_space<vmem>>, %arg9: memref<1x128xf32, #tpu.memory_space<vmem>>, %arg10: memref<128x128xbf16, #tpu.memory_space<vmem>>, %arg11: memref<1x128xf32, #tpu.memory_space<vmem>>, %arg12: memref<128x128xbf16, #tpu.memory_space<vmem>>, %arg13: memref<1x128xf32, #tpu.memory_space<vmem>>, %arg14: memref<16x128xf32, #tpu.memory_space<vmem>>, %arg15: memref<16x128xf32, #tpu.memory_space<vmem>>) attributes {dimension_semantics = [#tpu.dimension_semantics<parallel>], iteration_bounds = array<i64: 1>, scalar_prefetch = 0 : i64, scratch_operands = 0 : i64, tpu.core_type = #tpu.core_type<tc>, window_params = [{transform_indices = @transform_0, window_bounds = array<i64: 16, 128>}, {pipeline_mode = #tpu.pipeline_mode<synchronous>, transform_indices = @transform_1, window_bounds = array<i64: 128, 128>}, {pipeline_mode = #tpu.pipeline_mode<synchronous>, transform_indices = @transform_2, window_bounds = array<i64: 1, 128>}, {pipeline_mode = #tpu.pipeline_mode<synchronous>, transform_indices = @transform_3, window_bounds = array<i64: 128, 128>}, {pipeline_mode = #tpu.pipeline_mode<synchronous>, transform_indices = @transform_4, window_bounds = array<i64: 1, 128>}, {pipeline_mode = #tpu.pipeline_mode<synchronous>, transform_indices = @transform_5, window_bounds = array<i64: 128, 128>}, {pipeline_mode = #tpu.pipeline_mode<synchronous>, transform_indices = @transform_6, window_bounds = array<i64: 1, 128>}, {pipeline_mode = #tpu.pipeline_mode<synchronous>, transform_indices = @transform_7, window_bounds = array<i64: 128, 128>}, {pipeline_mode = #tpu.pipeline_mode<synchronous>, transform_indices = @transform_8, window_bounds = array<i64: 1, 128>}, {pipeline_mode = #tpu.pipeline_mode<synchronous>, transform_indices = @transform_9, window_bounds = array<i64: 128, 128>}, {pipeline_mode = #tpu.pipeline_mode<synchronous>, transform_indices = @transform_10, window_bounds = array<i64: 1, 128>}, {pipeline_mode = #tpu.pipeline_mode<synchronous>, transform_indices = @transform_11, window_bounds = array<i64: 128, 128>}, {pipeline_mode = #tpu.pipeline_mode<synchronous>, transform_indices = @transform_12, window_bounds = array<i64: 1, 128>}, {transform_indices = @transform_13, window_bounds = array<i64: 16, 128>}, {transform_indices = @transform_14, window_bounds = array<i64: 16, 128>}]} {
    %c0 = arith.constant 0 : index
    %c0_0 = arith.constant 0 : index
    %0 = vector.load %arg1[%c0, %c0_0] : memref<16x128xbf16, #tpu.memory_space<vmem>>, vector<16x128xbf16>
    %c0_1 = arith.constant 0 : index
    %c0_2 = arith.constant 0 : index
    %1 = vector.load %arg2[%c0_1, %c0_2] : memref<128x128xbf16, #tpu.memory_space<vmem>>, vector<128x128xbf16>
    %c0_3 = arith.constant 0 : index
    %c0_4 = arith.constant 0 : index
    %2 = vector.load %arg3[%c0_3, %c0_4] : memref<1x128xf32, #tpu.memory_space<vmem>>, vector<1x128xf32>
    %cst = arith.constant dense<0.000000e+00> : vector<16x128xf32>
    %3 = tpu.matmul %0, %1, %cst {dimension_numbers = #tpu.dot_dimension_numbers<[1], [0], [0], [1], [0, 0, 1, 1], [], []>} : vector<16x128xbf16>, vector<128x128xbf16>, vector<16x128xf32> -> vector<16x128xf32>
    %4 = vector.broadcast %2 : vector<1x128xf32> to vector<16x128xf32>
    %5 = arith.addf %3, %4 : vector<16x128xf32>
    %6 = math.tanh %5 : vector<16x128xf32>
    %c0_5 = arith.constant 0 : index
    %c0_6 = arith.constant 0 : index
    %7 = vector.load %arg4[%c0_5, %c0_6] : memref<128x128xbf16, #tpu.memory_space<vmem>>, vector<128x128xbf16>
    %c0_7 = arith.constant 0 : index
    %c0_8 = arith.constant 0 : index
    %8 = vector.load %arg5[%c0_7, %c0_8] : memref<1x128xf32, #tpu.memory_space<vmem>>, vector<1x128xf32>
    %9 = arith.truncf %6 : vector<16x128xf32> to vector<16x128xbf16>
    %cst_9 = arith.constant dense<0.000000e+00> : vector<16x128xf32>
    %10 = tpu.matmul %9, %7, %cst_9 {dimension_numbers = #tpu.dot_dimension_numbers<[1], [0], [0], [1], [0, 0, 1, 1], [], []>} : vector<16x128xbf16>, vector<128x128xbf16>, vector<16x128xf32> -> vector<16x128xf32>
    %11 = vector.broadcast %8 : vector<1x128xf32> to vector<16x128xf32>
    %12 = arith.addf %10, %11 : vector<16x128xf32>
    %13 = math.tanh %12 : vector<16x128xf32>
    %c0_10 = arith.constant 0 : index
    %c0_11 = arith.constant 0 : index
    %14 = vector.load %arg6[%c0_10, %c0_11] : memref<128x128xbf16, #tpu.memory_space<vmem>>, vector<128x128xbf16>
    %c0_12 = arith.constant 0 : index
    %c0_13 = arith.constant 0 : index
    %15 = vector.load %arg7[%c0_12, %c0_13] : memref<1x128xf32, #tpu.memory_space<vmem>>, vector<1x128xf32>
    %16 = arith.truncf %13 : vector<16x128xf32> to vector<16x128xbf16>
    %cst_14 = arith.constant dense<0.000000e+00> : vector<16x128xf32>
    %17 = tpu.matmul %16, %14, %cst_14 {dimension_numbers = #tpu.dot_dimension_numbers<[1], [0], [0], [1], [0, 0, 1, 1], [], []>} : vector<16x128xbf16>, vector<128x128xbf16>, vector<16x128xf32> -> vector<16x128xf32>
    %18 = vector.broadcast %15 : vector<1x128xf32> to vector<16x128xf32>
    %19 = arith.addf %17, %18 : vector<16x128xf32>
    %c0_15 = arith.constant 0 : index
    %c0_16 = arith.constant 0 : index
    %20 = vector.load %arg15[%c0_15, %c0_16] : memref<16x128xf32, #tpu.memory_space<vmem>>, vector<16x128xf32>
    tpu.vector_store %arg15[%c0_15, %c0_16], %19 {strides = array<i32>} : memref<16x128xf32, #tpu.memory_space<vmem>>, vector<16x128xf32>,
    %c0_17 = arith.constant 0 : index
    %c0_18 = arith.constant 0 : index
    %21 = vector.load %arg8[%c0_17, %c0_18] : memref<128x128xbf16, #tpu.memory_space<vmem>>, vector<128x128xbf16>
    %c0_19 = arith.constant 0 : index
    %c0_20 = arith.constant 0 : index
    %22 = vector.load %arg9[%c0_19, %c0_20] : memref<1x128xf32, #tpu.memory_space<vmem>>, vector<1x128xf32>
    %23 = arith.truncf %19 : vector<16x128xf32> to vector<16x128xbf16>
    %cst_21 = arith.constant dense<0.000000e+00> : vector<16x128xf32>
    %24 = tpu.matmul %23, %21, %cst_21 {dimension_numbers = #tpu.dot_dimension_numbers<[1], [0], [0], [1], [0, 0, 1, 1], [], []>} : vector<16x128xbf16>, vector<128x128xbf16>, vector<16x128xf32> -> vector<16x128xf32>
    %25 = vector.broadcast %22 : vector<1x128xf32> to vector<16x128xf32>
    %26 = arith.addf %24, %25 : vector<16x128xf32>
    %27 = math.tanh %26 : vector<16x128xf32>
    %c0_22 = arith.constant 0 : index
    %c0_23 = arith.constant 0 : index
    %28 = vector.load %arg10[%c0_22, %c0_23] : memref<128x128xbf16, #tpu.memory_space<vmem>>, vector<128x128xbf16>
    %c0_24 = arith.constant 0 : index
    %c0_25 = arith.constant 0 : index
    %29 = vector.load %arg11[%c0_24, %c0_25] : memref<1x128xf32, #tpu.memory_space<vmem>>, vector<1x128xf32>
    %30 = arith.truncf %27 : vector<16x128xf32> to vector<16x128xbf16>
    %cst_26 = arith.constant dense<0.000000e+00> : vector<16x128xf32>
    %31 = tpu.matmul %30, %28, %cst_26 {dimension_numbers = #tpu.dot_dimension_numbers<[1], [0], [0], [1], [0, 0, 1, 1], [], []>} : vector<16x128xbf16>, vector<128x128xbf16>, vector<16x128xf32> -> vector<16x128xf32>
    %32 = vector.broadcast %29 : vector<1x128xf32> to vector<16x128xf32>
    %33 = arith.addf %31, %32 : vector<16x128xf32>
    %34 = math.tanh %33 : vector<16x128xf32>
    %c0_27 = arith.constant 0 : index
    %c0_28 = arith.constant 0 : index
    %35 = vector.load %arg12[%c0_27, %c0_28] : memref<128x128xbf16, #tpu.memory_space<vmem>>, vector<128x128xbf16>
    %c0_29 = arith.constant 0 : index
    %c0_30 = arith.constant 0 : index
    %36 = vector.load %arg13[%c0_29, %c0_30] : memref<1x128xf32, #tpu.memory_space<vmem>>, vector<1x128xf32>
    %37 = arith.truncf %34 : vector<16x128xf32> to vector<16x128xbf16>
    %cst_31 = arith.constant dense<0.000000e+00> : vector<16x128xf32>
    %38 = tpu.matmul %37, %35, %cst_31 {dimension_numbers = #tpu.dot_dimension_numbers<[1], [0], [0], [1], [0, 0, 1, 1], [], []>} : vector<16x128xbf16>, vector<128x128xbf16>, vector<16x128xf32> -> vector<16x128xf32>
    %39 = vector.broadcast %36 : vector<1x128xf32> to vector<16x128xf32>
    %40 = arith.addf %38, %39 : vector<16x128xf32>
    %c0_32 = arith.constant 0 : index
    %c0_33 = arith.constant 0 : index
    %41 = vector.load %arg14[%c0_32, %c0_33] : memref<16x128xf32, #tpu.memory_space<vmem>>, vector<16x128xf32>
    tpu.vector_store %arg14[%c0_32, %c0_33], %40 {strides = array<i32>} : memref<16x128xf32, #tpu.memory_space<vmem>>, vector<16x128xf32>,
    return
  }
  func.func @transform_0(%arg0: i32) -> (i32, i32) {
    %c0_i32 = arith.constant 0 : i32
    %c0_i32_0 = arith.constant 0 : i32
    return %arg0, %c0_i32 : i32, i32
  }
  func.func @transform_1(%arg0: i32) -> (i32, i32) {
    %c0_i32 = arith.constant 0 : i32
    %c0_i32_0 = arith.constant 0 : i32
    %c0_i32_1 = arith.constant 0 : i32
    return %c0_i32, %c0_i32_0 : i32, i32
  }
  func.func @transform_2(%arg0: i32) -> (i32, i32) {
    %c0_i32 = arith.constant 0 : i32
    %c0_i32_0 = arith.constant 0 : i32
    %c0_i32_1 = arith.constant 0 : i32
    return %c0_i32, %c0_i32_0 : i32, i32
  }
  func.func @transform_3(%arg0: i32) -> (i32, i32) {
    %c0_i32 = arith.constant 0 : i32
    %c0_i32_0 = arith.constant 0 : i32
    %c0_i32_1 = arith.constant 0 : i32
    return %c0_i32, %c0_i32_0 : i32, i32
  }
  func.func @transform_4(%arg0: i32) -> (i32, i32) {
    %c0_i32 = arith.constant 0 : i32
    %c0_i32_0 = arith.constant 0 : i32
    %c0_i32_1 = arith.constant 0 : i32
    return %c0_i32, %c0_i32_0 : i32, i32
  }
  func.func @transform_5(%arg0: i32) -> (i32, i32) {
    %c0_i32 = arith.constant 0 : i32
    %c0_i32_0 = arith.constant 0 : i32
    %c0_i32_1 = arith.constant 0 : i32
    return %c0_i32, %c0_i32_0 : i32, i32
  }
  func.func @transform_6(%arg0: i32) -> (i32, i32) {
    %c0_i32 = arith.constant 0 : i32
    %c0_i32_0 = arith.constant 0 : i32
    %c0_i32_1 = arith.constant 0 : i32
    return %c0_i32, %c0_i32_0 : i32, i32
  }
  func.func @transform_7(%arg0: i32) -> (i32, i32) {
    %c0_i32 = arith.constant 0 : i32
    %c0_i32_0 = arith.constant 0 : i32
    %c0_i32_1 = arith.constant 0 : i32
    return %c0_i32, %c0_i32_0 : i32, i32
  }
  func.func @transform_8(%arg0: i32) -> (i32, i32) {
    %c0_i32 = arith.constant 0 : i32
    %c0_i32_0 = arith.constant 0 : i32
    %c0_i32_1 = arith.constant 0 : i32
    return %c0_i32, %c0_i32_0 : i32, i32
  }
  func.func @transform_9(%arg0: i32) -> (i32, i32) {
    %c0_i32 = arith.constant 0 : i32
    %c0_i32_0 = arith.constant 0 : i32
    %c0_i32_1 = arith.constant 0 : i32
    return %c0_i32, %c0_i32_0 : i32, i32
  }
  func.func @transform_10(%arg0: i32) -> (i32, i32) {
    %c0_i32 = arith.constant 0 : i32
    %c0_i32_0 = arith.constant 0 : i32
    %c0_i32_1 = arith.constant 0 : i32
    return %c0_i32, %c0_i32_0 : i32, i32
  }
  func.func @transform_11(%arg0: i32) -> (i32, i32) {
    %c0_i32 = arith.constant 0 : i32
    %c0_i32_0 = arith.constant 0 : i32
    %c0_i32_1 = arith.constant 0 : i32
    return %c0_i32, %c0_i32_0 : i32, i32
  }
  func.func @transform_12(%arg0: i32) -> (i32, i32) {
    %c0_i32 = arith.constant 0 : i32
    %c0_i32_0 = arith.constant 0 : i32
    %c0_i32_1 = arith.constant 0 : i32
    return %c0_i32, %c0_i32_0 : i32, i32
  }
  func.func @transform_13(%arg0: i32) -> (i32, i32) {
    %c0_i32 = arith.constant 0 : i32
    %c0_i32_0 = arith.constant 0 : i32
    return %arg0, %c0_i32 : i32, i32
  }
  func.func @transform_14(%arg0: i32) -> (i32, i32) {
    %c0_i32 = arith.constant 0 : i32
    %c0_i32_0 = arith.constant 0 : i32
    return %arg0, %c0_i32 : i32, i32
  }
}

</mosaic_0001>

<llo_original>
// kernel: _forward_padded.1
$region0: #{_forward_padded.1}
  #allocation0 [shape = 'u32[]', space=smem, size = 0x4, offset = 0x4, fixed_abs, tag = 'smem constant byte address 0x4 - core index']
  #allocation1 [shape = 'u32[144,128]{1,0:T(1,128)}', space=vmem, size = 0x12000, scoped, tag = 'internal scratch']
  %s0 = inlined_call_operand.vmem [shape: bf16[16,128], index: 0, kind: input, shape index: {}]
  %s1 = inlined_call_operand.hbm [shape: bf16[128,128], index: 1, kind: input, shape index: {}]
  %s2 = inlined_call_operand.vmem [shape: f32[1,128], index: 2, kind: input, shape index: {}]
  %s3 = inlined_call_operand.hbm [shape: bf16[128,128], index: 3, kind: input, shape index: {}]
  %s4 = inlined_call_operand.vmem [shape: f32[1,128], index: 4, kind: input, shape index: {}]
  %s5 = inlined_call_operand.hbm [shape: bf16[128,128], index: 5, kind: input, shape index: {}]
  %s6 = inlined_call_operand.vmem [shape: f32[1,128], index: 6, kind: input, shape index: {}]
  %s7 = inlined_call_operand.hbm [shape: bf16[128,128], index: 7, kind: input, shape index: {}]
  %s8 = inlined_call_operand.vmem [shape: f32[1,128], index: 8, kind: input, shape index: {}]
  %s9 = inlined_call_operand.hbm [shape: bf16[128,128], index: 9, kind: input, shape index: {}]
  %s10 = inlined_call_operand.vmem [shape: f32[1,128], index: 10, kind: input, shape index: {}]
  %s11 = inlined_call_operand.hbm [shape: bf16[128,128], index: 11, kind: input, shape index: {}]
  %s12 = inlined_call_operand.vmem [shape: f32[1,128], index: 12, kind: input, shape index: {}]
  %s13 = inlined_call_operand.vmem [shape: f32[16,128], index: 13, kind: output, shape index: {0}]
  %s14 = inlined_call_operand.vmem [shape: f32[16,128], index: 14, kind: output, shape index: {1}]
  %15 = xla_tuple %s13, %s14
  %s16 = sld [smem:[#allocation0]]
  $region94: #{_forward_padded.1} parent=0
    _
  %s18 = ssub.s32 1, %s16
  %s19 = scalar_select 0, %s18, %s16
  $region1: #{_forward_padded.1} parent=0
    #allocation2 [shape = 'u8[32768]{0}', space=vmem, size = 0x8000, scoped, tag = 'input window, operand 1, single buffered']
    #allocation3 [shape = 's32[1]{0}', space=sflag, size = 0x4, scoped, tag = 'scoped memory for _forward_padded.1']
    #allocation4 [shape = 'u8[32768]{0}', space=vmem, size = 0x8000, scoped, tag = 'input window, operand 3, single buffered']
    #allocation5 [shape = 's32[1]{0}', space=sflag, size = 0x4, scoped, tag = 'scoped memory for _forward_padded.1']
    #allocation6 [shape = 'u8[32768]{0}', space=vmem, size = 0x8000, scoped, tag = 'input window, operand 5, single buffered']
    #allocation7 [shape = 'u8[32768]{0}', space=vmem, size = 0x8000, scoped, tag = 'input window, operand 7, single buffered']
    #allocation8 [shape = 's32[1]{0}', space=sflag, size = 0x4, scoped, tag = 'scoped memory for _forward_padded.1']
    #allocation9 [shape = 'u8[32768]{0}', space=vmem, size = 0x8000, scoped, tag = 'input window, operand 9, single buffered']
    #allocation10 [shape = 'u8[32768]{0}', space=vmem, size = 0x8000, scoped, tag = 'input window, operand 11, single buffered']
    #allocation11 [shape = 's32[1]{0}', space=sflag, size = 0x4, scoped, tag = 'scoped memory for _forward_padded.1']
    %20 = vsyncpa [#allocation3], 0
    %21 = vsyncpa [#allocation5], 0
    %22 = vsyncpa [#allocation8], 0
    %23 = vsyncpa [#allocation11], 0
    // Predicated region
    $region2: #{_forward_padded.1} parent=1 // pred_check
      _
    $region3: #{_forward_padded.1} parent=1 // pred_check_branch
      %25 = sbr.rel (0) target = $region5
    $region4: #{_forward_padded.1} parent=1 // pred_region
      _
    $region5: #{_forward_padded.1} parent=1 // pred_fallthru
      _
    // Predicated region
    $region6: #{_forward_padded.1} parent=1 // pred_check
      _
    $region7: #{_forward_padded.1} parent=1 // pred_check_branch
      %27 = sbr.rel (0) target = $region9
    $region8: #{_forward_padded.1} parent=1 // pred_region
      %s29 = ssub.s32 1024, 1024
      %30 = vsyncadd [#allocation3], %s29
      %s31 = sshll.u32 [#allocation2], 4
      %s32 = int_to_ptr.vmem [resolvable:$true] %s31
      %37 = dma.hbm_to_vmem [thread:$0]  %s1, 1024, %s32, [#allocation3], 64, 64, 4
    $region9: #{_forward_padded.1} parent=1 // pred_fallthru
      _
    // Predicated region
    $region10: #{_forward_padded.1} parent=1 // pred_check
      _
    $region11: #{_forward_padded.1} parent=1 // pred_check_branch
      %39 = sbr.rel (0) target = $region13
    $region12: #{_forward_padded.1} parent=1 // pred_region
      _
    $region13: #{_forward_padded.1} parent=1 // pred_fallthru
      _
    // Predicated region
    $region14: #{_forward_padded.1} parent=1 // pred_check
      _
    $region15: #{_forward_padded.1} parent=1 // pred_check_branch
      %41 = sbr.rel (0) target = $region17
    $region16: #{_forward_padded.1} parent=1 // pred_region
      %s43 = ssub.s32 1024, 1024
      %44 = vsyncadd [#allocation5], %s43
      %s45 = sshll.u32 [#allocation4], 4
      %s46 = int_to_ptr.vmem [resolvable:$true] %s45
      %51 = dma.hbm_to_vmem [thread:$0]  %s3, 1024, %s46, [#allocation5], 64, 64, 4
    $region17: #{_forward_padded.1} parent=1 // pred_fallthru
      _
    // Predicated region
    $region18: #{_forward_padded.1} parent=1 // pred_check
      _
    $region19: #{_forward_padded.1} parent=1 // pred_check_branch
      %53 = sbr.rel (0) target = $region21
    $region20: #{_forward_padded.1} parent=1 // pred_region
      _
    $region21: #{_forward_padded.1} parent=1 // pred_fallthru
      _
    // Predicated region
    $region22: #{_forward_padded.1} parent=1 // pred_check
      _
    $region23: #{_forward_padded.1} parent=1 // pred_check_branch
      %55 = sbr.rel (0) target = $region25
    $region24: #{_forward_padded.1} parent=1 // pred_region
      %s57 = ssub.s32 1024, 1024
      %58 = vsyncadd [#allocation5], %s57
      %s59 = sshll.u32 [#allocation6], 4
      %s60 = int_to_ptr.vmem [resolvable:$true] %s59
      %65 = dma.hbm_to_vmem [thread:$0]  %s5, 1024, %s60, [#allocation5], 64, 64, 4
    $region25: #{_forward_padded.1} parent=1 // pred_fallthru
      _
    // Predicated region
    $region26: #{_forward_padded.1} parent=1 // pred_check
      _
    $region27: #{_forward_padded.1} parent=1 // pred_check_branch
      %67 = sbr.rel (0) target = $region29
    $region28: #{_forward_padded.1} parent=1 // pred_region
      _
    $region29: #{_forward_padded.1} parent=1 // pred_fallthru
      _
    // Predicated region
    $region30: #{_forward_padded.1} parent=1 // pred_check
      _
    $region31: #{_forward_padded.1} parent=1 // pred_check_branch
      %69 = sbr.rel (0) target = $region33
    $region32: #{_forward_padded.1} parent=1 // pred_region
      %s71 = ssub.s32 1024, 1024
      %72 = vsyncadd [#allocation8], %s71
      %s73 = sshll.u32 [#allocation7], 4
      %s74 = int_to_ptr.vmem [resolvable:$true] %s73
      %79 = dma.hbm_to_vmem [thread:$0]  %s7, 1024, %s74, [#allocation8], 64, 64, 4
    $region33: #{_forward_padded.1} parent=1 // pred_fallthru
      _
    // Predicated region
    $region34: #{_forward_padded.1} parent=1 // pred_check
      _
    $region35: #{_forward_padded.1} parent=1 // pred_check_branch
      %81 = sbr.rel (0) target = $region37
    $region36: #{_forward_padded.1} parent=1 // pred_region
      _
    $region37: #{_forward_padded.1} parent=1 // pred_fallthru
      _
    // Predicated region
    $region38: #{_forward_padded.1} parent=1 // pred_check
      _
    $region39: #{_forward_padded.1} parent=1 // pred_check_branch
      %83 = sbr.rel (0) target = $region41
    $region40: #{_forward_padded.1} parent=1 // pred_region
      %s85 = ssub.s32 1024, 1024
      %86 = vsyncadd [#allocation8], %s85
      %s87 = sshll.u32 [#allocation9], 4
      %s88 = int_to_ptr.vmem [resolvable:$true] %s87
      %93 = dma.hbm_to_vmem [thread:$0]  %s9, 1024, %s88, [#allocation8], 64, 64, 4
    $region41: #{_forward_padded.1} parent=1 // pred_fallthru
      _
    // Predicated region
    $region42: #{_forward_padded.1} parent=1 // pred_check
      _
    $region43: #{_forward_padded.1} parent=1 // pred_check_branch
      %95 = sbr.rel (0) target = $region45
    $region44: #{_forward_padded.1} parent=1 // pred_region
      _
    $region45: #{_forward_padded.1} parent=1 // pred_fallthru
      _
    // Predicated region
    $region46: #{_forward_padded.1} parent=1 // pred_check
      _
    $region47: #{_forward_padded.1} parent=1 // pred_check_branch
      %97 = sbr.rel (0) target = $region49
    $region48: #{_forward_padded.1} parent=1 // pred_region
      %s99 = ssub.s32 1024, 1024
      %100 = vsyncadd [#allocation11], %s99
      %s101 = sshll.u32 [#allocation10], 4
      %s102 = int_to_ptr.vmem [resolvable:$true] %s101
      %107 = dma.hbm_to_vmem [thread:$0]  %s11, 1024, %s102, [#allocation11], 64, 64, 4
    $region49: #{_forward_padded.1} parent=1 // pred_fallthru
      _
    // Predicated region
    $region50: #{_forward_padded.1} parent=1 // pred_check
      _
    $region51: #{_forward_padded.1} parent=1 // pred_check_branch
      %109 = sbr.rel (0) target = $region53
    $region52: #{_forward_padded.1} parent=1 // pred_region
      _
    $region53: #{_forward_padded.1} parent=1 // pred_fallthru
      _
    // Predicated region
    $region54: #{_forward_padded.1} parent=1 // pred_check
      _
    $region55: #{_forward_padded.1} parent=1 // pred_check_branch
      %111 = sbr.rel (0) target = $region57
    $region56: #{_forward_padded.1} parent=1 // pred_region
      %112 = dma.done [#allocation3], 1024
    $region57: #{_forward_padded.1} parent=1 // pred_fallthru
      _
    // Predicated region
    $region58: #{_forward_padded.1} parent=1 // pred_check
      _
    $region59: #{_forward_padded.1} parent=1 // pred_check_branch
      %114 = sbr.rel (0) target = $region61
    $region60: #{_forward_padded.1} parent=1 // pred_region
      %115 = dma.done [#allocation5], 1024
    $region61: #{_forward_padded.1} parent=1 // pred_fallthru
      _
    // Predicated region
    $region62: #{_forward_padded.1} parent=1 // pred_check
      _
    $region63: #{_forward_padded.1} parent=1 // pred_check_branch
      %117 = sbr.rel (0) target = $region65
    $region64: #{_forward_padded.1} parent=1 // pred_region
      %118 = dma.done [#allocation5], 1024
    $region65: #{_forward_padded.1} parent=1 // pred_fallthru
      _
    // Predicated region
    $region66: #{_forward_padded.1} parent=1 // pred_check
      _
    $region67: #{_forward_padded.1} parent=1 // pred_check_branch
      %120 = sbr.rel (0) target = $region69
    $region68: #{_forward_padded.1} parent=1 // pred_region
      %121 = dma.done [#allocation8], 1024
    $region69: #{_forward_padded.1} parent=1 // pred_fallthru
      _
    // Predicated region
    $region70: #{_forward_padded.1} parent=1 // pred_check
      _
    $region71: #{_forward_padded.1} parent=1 // pred_check_branch
      %123 = sbr.rel (0) target = $region73
    $region72: #{_forward_padded.1} parent=1 // pred_region
      %124 = dma.done [#allocation8], 1024
    $region73: #{_forward_padded.1} parent=1 // pred_fallthru
      _
    // Predicated region
    $region74: #{_forward_padded.1} parent=1 // pred_check
      _
    $region75: #{_forward_padded.1} parent=1 // pred_check_branch
      %126 = sbr.rel (0) target = $region77
    $region76: #{_forward_padded.1} parent=1 // pred_region
      %127 = dma.done [#allocation11], 1024
    $region77: #{_forward_padded.1} parent=1 // pred_fallthru
      _
    %v129 = vld [vmem:[%s0] sm:$0xf]
    %v130 = vld [vmem:[%s0 + $0x4] sm:$0xf]
    %v131 = vld [vmem:[#allocation2] sm:$0xf]
    %v132 = vld [vmem:[#allocation2 + $0x4] sm:$0xf]
    %v133 = vld [vmem:[#allocation2 + $0x8] sm:$0xf]
    %v134 = vld [vmem:[#allocation2 + $0xc] sm:$0xf]
    %v135 = vld [vmem:[#allocation2 + $0x10] sm:$0xf]
    %v136 = vld [vmem:[#allocation2 + $0x14] sm:$0xf]
    %v137 = vld [vmem:[#allocation2 + $0x18] sm:$0xf]
    %v138 = vld [vmem:[#allocation2 + $0x1c] sm:$0xf]
    %v139 = vld [vmem:[#allocation2 + $0x20] sm:$0xf]
    %v140 = vld [vmem:[#allocation2 + $0x24] sm:$0xf]
    %v141 = vld [vmem:[#allocation2 + $0x28] sm:$0xf]
    %v142 = vld [vmem:[#allocation2 + $0x2c] sm:$0xf]
    %v143 = vld [vmem:[#allocation2 + $0x30] sm:$0xf]
    %v144 = vld [vmem:[#allocation2 + $0x34] sm:$0xf]
    %v145 = vld [vmem:[#allocation2 + $0x38] sm:$0xf]
    %v146 = vld [vmem:[#allocation2 + $0x3c] sm:$0xf]
    %v147 = vld [vmem:[%s2] sm:$0x1]
    %v149 = vlaneseq
    %v150 = vshrl.u32 %v149, 7
    %v151 = vsub.s32 0, %v150
    %v152 = vrot.slane %v147, %v151
    %v156 = vunpack.c.l.b16 %v129
    %v157 = vunpack.c.l.b16 %v130
    %v158 = vpack.c.b16 %v157, %v156
    %v176 = vunpack.c.l.b16 %v131
    %v177 = vunpack.c.l.b16 %v132
    %v178 = vunpack.c.l.b16 %v133
    %v179 = vunpack.c.l.b16 %v134
    %v180 = vunpack.c.l.b16 %v135
    %v181 = vunpack.c.l.b16 %v136
    %v182 = vunpack.c.l.b16 %v137
    %v183 = vunpack.c.l.b16 %v138
    %v184 = vunpack.c.l.b16 %v139
    %v185 = vunpack.c.l.b16 %v140
    %v186 = vunpack.c.l.b16 %v141
    %v187 = vunpack.c.l.b16 %v142
    %v188 = vunpack.c.l.b16 %v143
    %v189 = vunpack.c.l.b16 %v144
    %v190 = vunpack.c.l.b16 %v145
    %v191 = vunpack.c.l.b16 %v146
    %v192 = vpack.c.b16 %v177, %v176
    %v193 = vpack.c.b16 %v179, %v178
    %v194 = vpack.c.b16 %v181, %v180
    %v195 = vpack.c.b16 %v183, %v182
    %v196 = vpack.c.b16 %v185, %v184
    %v197 = vpack.c.b16 %v187, %v186
    %v198 = vpack.c.b16 %v189, %v188
    %v199 = vpack.c.b16 %v191, %v190
    %208 = vmatprep.subr.bf16.mxu0 0
    %209 = vmatpush1.bf16.msra.mxu0 %v199
    %210 = vmatprep.subr.bf16.mxu0 0
    %211 = vmatpush1.bf16.msra.mxu0 %v198
    %212 = vmatprep.subr.bf16.mxu0 0
    %213 = vmatpush1.bf16.msra.mxu0 %v197
    %214 = vmatprep.subr.bf16.mxu0 0
    %215 = vmatpush1.bf16.msra.mxu0 %v196
    %216 = vmatprep.subr.bf16.mxu0 0
    %217 = vmatpush1.bf16.msra.mxu0 %v195
    %218 = vmatprep.subr.bf16.mxu0 0
    %219 = vmatpush1.bf16.msra.mxu0 %v194
    %220 = vmatprep.subr.bf16.mxu0 0
    %221 = vmatpush1.bf16.msra.mxu0 %v193
    %222 = vmatprep.subr.bf16.mxu0 0
    %223 = vmatpush1.bf16.msra.mxu0 %v192
    %224 = vmatprep.subr.bf16.mxu0 0
    %225 = vmatpush2.bf16.msra.mxu0 0
    %226 = vmatprep.subr.bf16.mxu0 0
    %227 = vmatpush2.bf16.msra.mxu0 0
    %228 = vmatprep.subr.bf16.mxu0 0
    %229 = vmatpush2.bf16.msra.mxu0 0
    %230 = vmatprep.subr.bf16.mxu0 0
    %231 = vmatpush2.bf16.msra.mxu0 0
    %232 = vmatprep.subr.bf16.mxu0 0
    %233 = vmatpush2.bf16.msra.mxu0 0
    %234 = vmatprep.subr.bf16.mxu0 0
    %235 = vmatpush2.bf16.msra.mxu0 0
    %236 = vmatprep.subr.bf16.mxu0 0
    %237 = vmatpush2.bf16.msra.mxu0 0
    %238 = vmatprep.subr.bf16.mxu0 0
    %239 = vmatpush2.bf16.msra.mxu0 0
    %240 = vmatprep.mubr.bf16.mxu0 0
    %241 = vmatmul.mubr.bf16.gmra.mxu0 %v158
    %v242 = vpop.f32.mrf.mxu0
    %v243 = vadd.f32 %v152, %v242
    %v244 = vpop.f32.mrf.mxu0
    %v245 = vpop.f32.mrf.mxu0
    %v246 = vadd.f32 %v152, %v245
    %v247 = vpop.f32.mrf.mxu0
    %248 = vdwg.mxu0
    %v249 = vtanh.pop %v243
    %v250 = vtanh.pop %v246
    %v251 = vld [vmem:[#allocation4] sm:$0xf]
    %v252 = vld [vmem:[#allocation4 + $0x4] sm:$0xf]
    %v253 = vld [vmem:[#allocation4 + $0x8] sm:$0xf]
    %v254 = vld [vmem:[#allocation4 + $0xc] sm:$0xf]
    %v255 = vld [vmem:[#allocation4 + $0x10] sm:$0xf]
    %v256 = vld [vmem:[#allocation4 + $0x14] sm:$0xf]
    %v257 = vld [vmem:[#allocation4 + $0x18] sm:$0xf]
    %v258 = vld [vmem:[#allocation4 + $0x1c] sm:$0xf]
    %v259 = vld [vmem:[#allocation4 + $0x20] sm:$0xf]
    %v260 = vld [vmem:[#allocation4 + $0x24] sm:$0xf]
    %v261 = vld [vmem:[#allocation4 + $0x28] sm:$0xf]
    %v262 = vld [vmem:[#allocation4 + $0x2c] sm:$0xf]
    %v263 = vld [vmem:[#allocation4 + $0x30] sm:$0xf]
    %v264 = vld [vmem:[#allocation4 + $0x34] sm:$0xf]
    %v265 = vld [vmem:[#allocation4 + $0x38] sm:$0xf]
    %v266 = vld [vmem:[#allocation4 + $0x3c] sm:$0xf]
    %v267 = vld [vmem:[%s4] sm:$0x1]
    %v268 = vpack.c.bf16 %v250, %v249
    %v270 = vlaneseq
    %v271 = vshrl.u32 %v270, 7
    %v272 = vsub.s32 0, %v271
    %v273 = vrot.slane %v267, %v272
    %v291 = vunpack.c.l.b16 %v251
    %v292 = vunpack.c.l.b16 %v252
    %v293 = vunpack.c.l.b16 %v253
    %v294 = vunpack.c.l.b16 %v254
    %v295 = vunpack.c.l.b16 %v255
    %v296 = vunpack.c.l.b16 %v256
    %v297 = vunpack.c.l.b16 %v257
    %v298 = vunpack.c.l.b16 %v258
    %v299 = vunpack.c.l.b16 %v259
    %v300 = vunpack.c.l.b16 %v260
    %v301 = vunpack.c.l.b16 %v261
    %v302 = vunpack.c.l.b16 %v262
    %v303 = vunpack.c.l.b16 %v263
    %v304 = vunpack.c.l.b16 %v264
    %v305 = vunpack.c.l.b16 %v265
    %v306 = vunpack.c.l.b16 %v266
    %v307 = vpack.c.b16 %v292, %v291
    %v308 = vpack.c.b16 %v294, %v293
    %v309 = vpack.c.b16 %v296, %v295
    %v310 = vpack.c.b16 %v298, %v297
    %v311 = vpack.c.b16 %v300, %v299
    %v312 = vpack.c.b16 %v302, %v301
    %v313 = vpack.c.b16 %v304, %v303
    %v314 = vpack.c.b16 %v306, %v305
    %323 = vmatprep.subr.bf16.mxu0 0
    %324 = vmatpush1.bf16.msra.mxu0 %v314
    %325 = vmatprep.subr.bf16.mxu0 0
    %326 = vmatpush1.bf16.msra.mxu0 %v313
    %327 = vmatprep.subr.bf16.mxu0 0
    %328 = vmatpush1.bf16.msra.mxu0 %v312
    %329 = vmatprep.subr.bf16.mxu0 0
    %330 = vmatpush1.bf16.msra.mxu0 %v311
    %331 = vmatprep.subr.bf16.mxu0 0
    %332 = vmatpush1.bf16.msra.mxu0 %v310
    %333 = vmatprep.subr.bf16.mxu0 0
    %334 = vmatpush1.bf16.msra.mxu0 %v309
    %335 = vmatprep.subr.bf16.mxu0 0
    %336 = vmatpush1.bf16.msra.mxu0 %v308
    %337 = vmatprep.subr.bf16.mxu0 0
    %338 = vmatpush1.bf16.msra.mxu0 %v307
    %339 = vmatprep.subr.bf16.mxu0 0
    %340 = vmatpush2.bf16.msra.mxu0 0
    %341 = vmatprep.subr.bf16.mxu0 0
    %342 = vmatpush2.bf16.msra.mxu0 0
    %343 = vmatprep.subr.bf16.mxu0 0
    %344 = vmatpush2.bf16.msra.mxu0 0
    %345 = vmatprep.subr.bf16.mxu0 0
    %346 = vmatpush2.bf16.msra.mxu0 0
    %347 = vmatprep.subr.bf16.mxu0 0
    %348 = vmatpush2.bf16.msra.mxu0 0
    %349 = vmatprep.subr.bf16.mxu0 0
    %350 = vmatpush2.bf16.msra.mxu0 0
    %351 = vmatprep.subr.bf16.mxu0 0
    %352 = vmatpush2.bf16.msra.mxu0 0
    %353 = vmatprep.subr.bf16.mxu0 0
    %354 = vmatpush2.bf16.msra.mxu0 0
    %355 = vmatprep.mubr.bf16.mxu0 0
    %356 = vmatmul.mubr.bf16.gmra.mxu0 %v268
    %v357 = vpop.f32.mrf.mxu0
    %v358 = vadd.f32 %v273, %v357
    %v359 = vpop.f32.mrf.mxu0
    %v360 = vpop.f32.mrf.mxu0
    %v361 = vadd.f32 %v273, %v360
    %v362 = vpop.f32.mrf.mxu0
    %363 = vdwg.mxu0
    %v364 = vtanh.pop %v358
    %v365 = vtanh.pop %v361
    %v366 = vld [vmem:[#allocation6] sm:$0xf]
    %v367 = vld [vmem:[#allocation6 + $0x4] sm:$0xf]
    %v368 = vld [vmem:[#allocation6 + $0x8] sm:$0xf]
    %v369 = vld [vmem:[#allocation6 + $0xc] sm:$0xf]
    %v370 = vld [vmem:[#allocation6 + $0x10] sm:$0xf]
    %v371 = vld [vmem:[#allocation6 + $0x14] sm:$0xf]
    %v372 = vld [vmem:[#allocation6 + $0x18] sm:$0xf]
    %v373 = vld [vmem:[#allocation6 + $0x1c] sm:$0xf]
    %v374 = vld [vmem:[#allocation6 + $0x20] sm:$0xf]
    %v375 = vld [vmem:[#allocation6 + $0x24] sm:$0xf]
    %v376 = vld [vmem:[#allocation6 + $0x28] sm:$0xf]
    %v377 = vld [vmem:[#allocation6 + $0x2c] sm:$0xf]
    %v378 = vld [vmem:[#allocation6 + $0x30] sm:$0xf]
    %v379 = vld [vmem:[#allocation6 + $0x34] sm:$0xf]
    %v380 = vld [vmem:[#allocation6 + $0x38] sm:$0xf]
    %v381 = vld [vmem:[#allocation6 + $0x3c] sm:$0xf]
    %v382 = vld [vmem:[%s6] sm:$0x1]
    %v383 = vpack.c.bf16 %v365, %v364
    %v385 = vlaneseq
    %v386 = vshrl.u32 %v385, 7
    %v387 = vsub.s32 0, %v386
    %v388 = vrot.slane %v382, %v387
    %v406 = vunpack.c.l.b16 %v366
    %v407 = vunpack.c.l.b16 %v367
    %v408 = vunpack.c.l.b16 %v368
    %v409 = vunpack.c.l.b16 %v369
    %v410 = vunpack.c.l.b16 %v370
    %v411 = vunpack.c.l.b16 %v371
    %v412 = vunpack.c.l.b16 %v372
    %v413 = vunpack.c.l.b16 %v373
    %v414 = vunpack.c.l.b16 %v374
    %v415 = vunpack.c.l.b16 %v375
    %v416 = vunpack.c.l.b16 %v376
    %v417 = vunpack.c.l.b16 %v377
    %v418 = vunpack.c.l.b16 %v378
    %v419 = vunpack.c.l.b16 %v379
    %v420 = vunpack.c.l.b16 %v380
    %v421 = vunpack.c.l.b16 %v381
    %v422 = vpack.c.b16 %v407, %v406
    %v423 = vpack.c.b16 %v409, %v408
    %v424 = vpack.c.b16 %v411, %v410
    %v425 = vpack.c.b16 %v413, %v412
    %v426 = vpack.c.b16 %v415, %v414
    %v427 = vpack.c.b16 %v417, %v416
    %v428 = vpack.c.b16 %v419, %v418
    %v429 = vpack.c.b16 %v421, %v420
    %438 = vmatprep.subr.bf16.mxu0 0
    %439 = vmatpush1.bf16.msra.mxu0 %v429
    %440 = vmatprep.subr.bf16.mxu0 0
    %441 = vmatpush1.bf16.msra.mxu0 %v428
    %442 = vmatprep.subr.bf16.mxu0 0
    %443 = vmatpush1.bf16.msra.mxu0 %v427
    %444 = vmatprep.subr.bf16.mxu0 0
    %445 = vmatpush1.bf16.msra.mxu0 %v426
    %446 = vmatprep.subr.bf16.mxu0 0
    %447 = vmatpush1.bf16.msra.mxu0 %v425
    %448 = vmatprep.subr.bf16.mxu0 0
    %449 = vmatpush1.bf16.msra.mxu0 %v424
    %450 = vmatprep.subr.bf16.mxu0 0
    %451 = vmatpush1.bf16.msra.mxu0 %v423
    %452 = vmatprep.subr.bf16.mxu0 0
    %453 = vmatpush1.bf16.msra.mxu0 %v422
    %454 = vmatprep.subr.bf16.mxu0 0
    %455 = vmatpush2.bf16.msra.mxu0 0
    %456 = vmatprep.subr.bf16.mxu0 0
    %457 = vmatpush2.bf16.msra.mxu0 0
    %458 = vmatprep.subr.bf16.mxu0 0
    %459 = vmatpush2.bf16.msra.mxu0 0
    %460 = vmatprep.subr.bf16.mxu0 0
    %461 = vmatpush2.bf16.msra.mxu0 0
    %462 = vmatprep.subr.bf16.mxu0 0
    %463 = vmatpush2.bf16.msra.mxu0 0
    %464 = vmatprep.subr.bf16.mxu0 0
    %465 = vmatpush2.bf16.msra.mxu0 0
    %466 = vmatprep.subr.bf16.mxu0 0
    %467 = vmatpush2.bf16.msra.mxu0 0
    %468 = vmatprep.subr.bf16.mxu0 0
    %469 = vmatpush2.bf16.msra.mxu0 0
    %470 = vmatprep.mubr.bf16.mxu0 0
    %471 = vmatmul.mubr.bf16.gmra.mxu0 %v383
    %v472 = vpop.f32.mrf.mxu0
    %v473 = vadd.f32 %v388, %v472
    %v474 = vpop.f32.mrf.mxu0
    %v475 = vpop.f32.mrf.mxu0
    %v476 = vadd.f32 %v388, %v475
    %v477 = vpop.f32.mrf.mxu0
    %478 = vdwg.mxu0
    %479 = vst [vmem:[%s14] sm:$0xff] %v473
    %480 = vst [vmem:[%s14 + $0x8] sm:$0xff] %v476
    %v481 = vld [vmem:[#allocation7] sm:$0xf]
    %v482 = vld [vmem:[#allocation7 + $0x4] sm:$0xf]
    %v483 = vld [vmem:[#allocation7 + $0x8] sm:$0xf]
    %v484 = vld [vmem:[#allocation7 + $0xc] sm:$0xf]
    %v485 = vld [vmem:[#allocation7 + $0x10] sm:$0xf]
    %v486 = vld [vmem:[#allocation7 + $0x14] sm:$0xf]
    %v487 = vld [vmem:[#allocation7 + $0x18] sm:$0xf]
    %v488 = vld [vmem:[#allocation7 + $0x1c] sm:$0xf]
    %v489 = vld [vmem:[#allocation7 + $0x20] sm:$0xf]
    %v490 = vld [vmem:[#allocation7 + $0x24] sm:$0xf]
    %v491 = vld [vmem:[#allocation7 + $0x28] sm:$0xf]
    %v492 = vld [vmem:[#allocation7 + $0x2c] sm:$0xf]
    %v493 = vld [vmem:[#allocation7 + $0x30] sm:$0xf]
    %v494 = vld [vmem:[#allocation7 + $0x34] sm:$0xf]
    %v495 = vld [vmem:[#allocation7 + $0x38] sm:$0xf]
    %v496 = vld [vmem:[#allocation7 + $0x3c] sm:$0xf]
    %v497 = vld [vmem:[%s8] sm:$0x1]
    %v498 = vpack.c.bf16 %v476, %v473
    %v500 = vlaneseq
    %v501 = vshrl.u32 %v500, 7
    %v502 = vsub.s32 0, %v501
    %v503 = vrot.slane %v497, %v502
    %v521 = vunpack.c.l.b16 %v481
    %v522 = vunpack.c.l.b16 %v482
    %v523 = vunpack.c.l.b16 %v483
    %v524 = vunpack.c.l.b16 %v484
    %v525 = vunpack.c.l.b16 %v485
    %v526 = vunpack.c.l.b16 %v486
    %v527 = vunpack.c.l.b16 %v487
    %v528 = vunpack.c.l.b16 %v488
    %v529 = vunpack.c.l.b16 %v489
    %v530 = vunpack.c.l.b16 %v490
    %v531 = vunpack.c.l.b16 %v491
    %v532 = vunpack.c.l.b16 %v492
    %v533 = vunpack.c.l.b16 %v493
    %v534 = vunpack.c.l.b16 %v494
    %v535 = vunpack.c.l.b16 %v495
    %v536 = vunpack.c.l.b16 %v496
    %v537 = vpack.c.b16 %v522, %v521
    %v538 = vpack.c.b16 %v524, %v523
    %v539 = vpack.c.b16 %v526, %v525
    %v540 = vpack.c.b16 %v528, %v527
    %v541 = vpack.c.b16 %v530, %v529
    %v542 = vpack.c.b16 %v532, %v531
    %v543 = vpack.c.b16 %v534, %v533
    %v544 = vpack.c.b16 %v536, %v535
    %553 = vmatprep.subr.bf16.mxu0 0
    %554 = vmatpush1.bf16.msra.mxu0 %v544
    %555 = vmatprep.subr.bf16.mxu0 0
    %556 = vmatpush1.bf16.msra.mxu0 %v543
    %557 = vmatprep.subr.bf16.mxu0 0
    %558 = vmatpush1.bf16.msra.mxu0 %v542
    %559 = vmatprep.subr.bf16.mxu0 0
    %560 = vmatpush1.bf16.msra.mxu0 %v541
    %561 = vmatprep.subr.bf16.mxu0 0
    %562 = vmatpush1.bf16.msra.mxu0 %v540
    %563 = vmatprep.subr.bf16.mxu0 0
    %564 = vmatpush1.bf16.msra.mxu0 %v539
    %565 = vmatprep.subr.bf16.mxu0 0
    %566 = vmatpush1.bf16.msra.mxu0 %v538
    %567 = vmatprep.subr.bf16.mxu0 0
    %568 = vmatpush1.bf16.msra.mxu0 %v537
    %569 = vmatprep.subr.bf16.mxu0 0
    %570 = vmatpush2.bf16.msra.mxu0 0
    %571 = vmatprep.subr.bf16.mxu0 0
    %572 = vmatpush2.bf16.msra.mxu0 0
    %573 = vmatprep.subr.bf16.mxu0 0
    %574 = vmatpush2.bf16.msra.mxu0 0
    %575 = vmatprep.subr.bf16.mxu0 0
    %576 = vmatpush2.bf16.msra.mxu0 0
    %577 = vmatprep.subr.bf16.mxu0 0
    %578 = vmatpush2.bf16.msra.mxu0 0
    %579 = vmatprep.subr.bf16.mxu0 0
    %580 = vmatpush2.bf16.msra.mxu0 0
    %581 = vmatprep.subr.bf16.mxu0 0
    %582 = vmatpush2.bf16.msra.mxu0 0
    %583 = vmatprep.subr.bf16.mxu0 0
    %584 = vmatpush2.bf16.msra.mxu0 0
    %585 = vmatprep.mubr.bf16.mxu0 0
    %586 = vmatmul.mubr.bf16.gmra.mxu0 %v498
    %v587 = vpop.f32.mrf.mxu0
    %v588 = vadd.f32 %v503, %v587
    %v589 = vpop.f32.mrf.mxu0
    %v590 = vpop.f32.mrf.mxu0
    %v591 = vadd.f32 %v503, %v590
    %v592 = vpop.f32.mrf.mxu0
    %593 = vdwg.mxu0
    %v594 = vtanh.pop %v588
    %v595 = vtanh.pop %v591
    %v596 = vld [vmem:[#allocation9] sm:$0xf]
    %v597 = vld [vmem:[#allocation9 + $0x4] sm:$0xf]
    %v598 = vld [vmem:[#allocation9 + $0x8] sm:$0xf]
    %v599 = vld [vmem:[#allocation9 + $0xc] sm:$0xf]
    %v600 = vld [vmem:[#allocation9 + $0x10] sm:$0xf]
    %v601 = vld [vmem:[#allocation9 + $0x14] sm:$0xf]
    %v602 = vld [vmem:[#allocation9 + $0x18] sm:$0xf]
    %v603 = vld [vmem:[#allocation9 + $0x1c] sm:$0xf]
    %v604 = vld [vmem:[#allocation9 + $0x20] sm:$0xf]
    %v605 = vld [vmem:[#allocation9 + $0x24] sm:$0xf]
    %v606 = vld [vmem:[#allocation9 + $0x28] sm:$0xf]
    %v607 = vld [vmem:[#allocation9 + $0x2c] sm:$0xf]
    %v608 = vld [vmem:[#allocation9 + $0x30] sm:$0xf]
    %v609 = vld [vmem:[#allocation9 + $0x34] sm:$0xf]
    %v610 = vld [vmem:[#allocation9 + $0x38] sm:$0xf]
    %v611 = vld [vmem:[#allocation9 + $0x3c] sm:$0xf]
    %v612 = vld [vmem:[%s10] sm:$0x1]
    %v613 = vpack.c.bf16 %v595, %v594
    %v615 = vlaneseq
    %v616 = vshrl.u32 %v615, 7
    %v617 = vsub.s32 0, %v616
    %v618 = vrot.slane %v612, %v617
    %v636 = vunpack.c.l.b16 %v596
    %v637 = vunpack.c.l.b16 %v597
    %v638 = vunpack.c.l.b16 %v598
    %v639 = vunpack.c.l.b16 %v599
    %v640 = vunpack.c.l.b16 %v600
    %v641 = vunpack.c.l.b16 %v601
    %v642 = vunpack.c.l.b16 %v602
    %v643 = vunpack.c.l.b16 %v603
    %v644 = vunpack.c.l.b16 %v604
    %v645 = vunpack.c.l.b16 %v605
    %v646 = vunpack.c.l.b16 %v606
    %v647 = vunpack.c.l.b16 %v607
    %v648 = vunpack.c.l.b16 %v608
    %v649 = vunpack.c.l.b16 %v609
    %v650 = vunpack.c.l.b16 %v610
    %v651 = vunpack.c.l.b16 %v611
    %v652 = vpack.c.b16 %v637, %v636
    %v653 = vpack.c.b16 %v639, %v638
    %v654 = vpack.c.b16 %v641, %v640
    %v655 = vpack.c.b16 %v643, %v642
    %v656 = vpack.c.b16 %v645, %v644
    %v657 = vpack.c.b16 %v647, %v646
    %v658 = vpack.c.b16 %v649, %v648
    %v659 = vpack.c.b16 %v651, %v650
    %668 = vmatprep.subr.bf16.mxu0 0
    %669 = vmatpush1.bf16.msra.mxu0 %v659
    %670 = vmatprep.subr.bf16.mxu0 0
    %671 = vmatpush1.bf16.msra.mxu0 %v658
    %672 = vmatprep.subr.bf16.mxu0 0
    %673 = vmatpush1.bf16.msra.mxu0 %v657
    %674 = vmatprep.subr.bf16.mxu0 0
    %675 = vmatpush1.bf16.msra.mxu0 %v656
    %676 = vmatprep.subr.bf16.mxu0 0
    %677 = vmatpush1.bf16.msra.mxu0 %v655
    %678 = vmatprep.subr.bf16.mxu0 0
    %679 = vmatpush1.bf16.msra.mxu0 %v654
    %680 = vmatprep.subr.bf16.mxu0 0
    %681 = vmatpush1.bf16.msra.mxu0 %v653
    %682 = vmatprep.subr.bf16.mxu0 0
    %683 = vmatpush1.bf16.msra.mxu0 %v652
    %684 = vmatprep.subr.bf16.mxu0 0
    %685 = vmatpush2.bf16.msra.mxu0 0
    %686 = vmatprep.subr.bf16.mxu0 0
    %687 = vmatpush2.bf16.msra.mxu0 0
    %688 = vmatprep.subr.bf16.mxu0 0
    %689 = vmatpush2.bf16.msra.mxu0 0
    %690 = vmatprep.subr.bf16.mxu0 0
    %691 = vmatpush2.bf16.msra.mxu0 0
    %692 = vmatprep.subr.bf16.mxu0 0
    %693 = vmatpush2.bf16.msra.mxu0 0
    %694 = vmatprep.subr.bf16.mxu0 0
    %695 = vmatpush2.bf16.msra.mxu0 0
    %696 = vmatprep.subr.bf16.mxu0 0
    %697 = vmatpush2.bf16.msra.mxu0 0
    %698 = vmatprep.subr.bf16.mxu0 0
    %699 = vmatpush2.bf16.msra.mxu0 0
    %700 = vmatprep.mubr.bf16.mxu0 0
    %701 = vmatmul.mubr.bf16.gmra.mxu0 %v613
    %v702 = vpop.f32.mrf.mxu0
    %v703 = vadd.f32 %v618, %v702
    %v704 = vpop.f32.mrf.mxu0
    %v705 = vpop.f32.mrf.mxu0
    %v706 = vadd.f32 %v618, %v705
    %v707 = vpop.f32.mrf.mxu0
    %708 = vdwg.mxu0
    %v709 = vtanh.pop %v703
    %v710 = vtanh.pop %v706
    %v711 = vld [vmem:[#allocation10] sm:$0xf]
    %v712 = vld [vmem:[#allocation10 + $0x4] sm:$0xf]
    %v713 = vld [vmem:[#allocation10 + $0x8] sm:$0xf]
    %v714 = vld [vmem:[#allocation10 + $0xc] sm:$0xf]
    %v715 = vld [vmem:[#allocation10 + $0x10] sm:$0xf]
    %v716 = vld [vmem:[#allocation10 + $0x14] sm:$0xf]
    %v717 = vld [vmem:[#allocation10 + $0x18] sm:$0xf]
    %v718 = vld [vmem:[#allocation10 + $0x1c] sm:$0xf]
    %v719 = vld [vmem:[#allocation10 + $0x20] sm:$0xf]
    %v720 = vld [vmem:[#allocation10 + $0x24] sm:$0xf]
    %v721 = vld [vmem:[#allocation10 + $0x28] sm:$0xf]
    %v722 = vld [vmem:[#allocation10 + $0x2c] sm:$0xf]
    %v723 = vld [vmem:[#allocation10 + $0x30] sm:$0xf]
    %v724 = vld [vmem:[#allocation10 + $0x34] sm:$0xf]
    %v725 = vld [vmem:[#allocation10 + $0x38] sm:$0xf]
    %v726 = vld [vmem:[#allocation10 + $0x3c] sm:$0xf]
    %v727 = vld [vmem:[%s12] sm:$0x1]
    %v728 = vpack.c.bf16 %v710, %v709
    %v730 = vlaneseq
    %v731 = vshrl.u32 %v730, 7
    %v732 = vsub.s32 0, %v731
    %v733 = vrot.slane %v727, %v732
    %v751 = vunpack.c.l.b16 %v711
    %v752 = vunpack.c.l.b16 %v712
    %v753 = vunpack.c.l.b16 %v713
    %v754 = vunpack.c.l.b16 %v714
    %v755 = vunpack.c.l.b16 %v715
    %v756 = vunpack.c.l.b16 %v716
    %v757 = vunpack.c.l.b16 %v717
    %v758 = vunpack.c.l.b16 %v718
    %v759 = vunpack.c.l.b16 %v719
    %v760 = vunpack.c.l.b16 %v720
    %v761 = vunpack.c.l.b16 %v721
    %v762 = vunpack.c.l.b16 %v722
    %v763 = vunpack.c.l.b16 %v723
    %v764 = vunpack.c.l.b16 %v724
    %v765 = vunpack.c.l.b16 %v725
    %v766 = vunpack.c.l.b16 %v726
    %v767 = vpack.c.b16 %v752, %v751
    %v768 = vpack.c.b16 %v754, %v753
    %v769 = vpack.c.b16 %v756, %v755
    %v770 = vpack.c.b16 %v758, %v757
    %v771 = vpack.c.b16 %v760, %v759
    %v772 = vpack.c.b16 %v762, %v761
    %v773 = vpack.c.b16 %v764, %v763
    %v774 = vpack.c.b16 %v766, %v765
    %783 = vmatprep.subr.bf16.mxu0 0
    %784 = vmatpush1.bf16.msra.mxu0 %v774
    %785 = vmatprep.subr.bf16.mxu0 0
    %786 = vmatpush1.bf16.msra.mxu0 %v773
    %787 = vmatprep.subr.bf16.mxu0 0
    %788 = vmatpush1.bf16.msra.mxu0 %v772
    %789 = vmatprep.subr.bf16.mxu0 0
    %790 = vmatpush1.bf16.msra.mxu0 %v771
    %791 = vmatprep.subr.bf16.mxu0 0
    %792 = vmatpush1.bf16.msra.mxu0 %v770
    %793 = vmatprep.subr.bf16.mxu0 0
    %794 = vmatpush1.bf16.msra.mxu0 %v769
    %795 = vmatprep.subr.bf16.mxu0 0
    %796 = vmatpush1.bf16.msra.mxu0 %v768
    %797 = vmatprep.subr.bf16.mxu0 0
    %798 = vmatpush1.bf16.msra.mxu0 %v767
    %799 = vmatprep.subr.bf16.mxu0 0
    %800 = vmatpush2.bf16.msra.mxu0 0
    %801 = vmatprep.subr.bf16.mxu0 0
    %802 = vmatpush2.bf16.msra.mxu0 0
    %803 = vmatprep.subr.bf16.mxu0 0
    %804 = vmatpush2.bf16.msra.mxu0 0
    %805 = vmatprep.subr.bf16.mxu0 0
    %806 = vmatpush2.bf16.msra.mxu0 0
    %807 = vmatprep.subr.bf16.mxu0 0
    %808 = vmatpush2.bf16.msra.mxu0 0
    %809 = vmatprep.subr.bf16.mxu0 0
    %810 = vmatpush2.bf16.msra.mxu0 0
    %811 = vmatprep.subr.bf16.mxu0 0
    %812 = vmatpush2.bf16.msra.mxu0 0
    %813 = vmatprep.subr.bf16.mxu0 0
    %814 = vmatpush2.bf16.msra.mxu0 0
    %815 = vmatprep.mubr.bf16.mxu0 0
    %816 = vmatmul.mubr.bf16.gmra.mxu0 %v728
    %v817 = vpop.f32.mrf.mxu0
    %v818 = vadd.f32 %v733, %v817
    %v819 = vpop.f32.mrf.mxu0
    %v820 = vpop.f32.mrf.mxu0
    %v821 = vadd.f32 %v733, %v820
    %v822 = vpop.f32.mrf.mxu0
    %823 = vdwg.mxu0
    %824 = vst [vmem:[%s13] sm:$0xff] %v818
    %825 = vst [vmem:[%s13 + $0x8] sm:$0xff] %v821
    // Predicated region
    $region78: #{_forward_padded.1} parent=1 // pred_check
      _
    $region79: #{_forward_padded.1} parent=1 // pred_check_branch
      %827 = sbr.rel (0) target = $region81
    $region80: #{_forward_padded.1} parent=1 // pred_region
      _
    $region81: #{_forward_padded.1} parent=1 // pred_fallthru
      _
    // Predicated region
    $region82: #{_forward_padded.1} parent=1 // pred_check
      _
    $region83: #{_forward_padded.1} parent=1 // pred_check_branch
      %829 = sbr.rel (0) target = $region85
    $region84: #{_forward_padded.1} parent=1 // pred_region
      _
    $region85: #{_forward_padded.1} parent=1 // pred_fallthru
      _
    // Predicated region
    $region86: #{_forward_padded.1} parent=1 // pred_check
      _
    $region87: #{_forward_padded.1} parent=1 // pred_check_branch
      %831 = sbr.rel (0) target = $region89
    $region88: #{_forward_padded.1} parent=1 // pred_region
      _
    $region89: #{_forward_padded.1} parent=1 // pred_fallthru
      _
    // Predicated region
    $region90: #{_forward_padded.1} parent=1 // pred_check
      _
    $region91: #{_forward_padded.1} parent=1 // pred_check_branch
      %833 = sbr.rel (0) target = $region93
    $region92: #{_forward_padded.1} parent=1 // pred_region
      _
    $region93: #{_forward_padded.1} parent=1 // pred_fallthru
      _
    %834 = vsyncpa [#allocation3], 1
    %835 = vsyncpa [#allocation5], 1
    %836 = vsyncpa [#allocation8], 1
    %837 = vsyncpa [#allocation11], 1

</llo_original>
